<compile_context>
chip_gen: v7x
topology: tpu7x:2x2x1
jax: 0.10.0
libtpu: 0.0.40
codegen_flags: <defaults>
</compile_context>

<pallas_src>
import jax
import jax.numpy as jnp
from jax.experimental import pallas as pl
from jax.experimental.pallas import tpu as pltpu

NEG_SLOPE = 0.01  # PyTorch nn.LeakyReLU default


def _leaky_relu(x):
    return jnp.where(x > 0, x, NEG_SLOPE * x)


def _round_up(x, m):
    return ((x + m - 1) // m) * m


def _make_kernel(mxu_bf16):
    mxu_dtype = jnp.bfloat16 if mxu_bf16 else jnp.float32

    def kernel(x_ref, w0_ref, w1_ref, w2t_ref, w3t_ref, o_ref):
        # x_ref:   (1, 66, TM) f32 pixel tile (channels on sublanes, pixels on lanes)
        # w0_ref:  (32, 66)   w1_ref:  (16, 32)   -- MXU layers
        # w2t_ref: (16, 8)    w3t_ref: (8, 1)     -- VPU layers, stored (Cin, Cout)
        # o_ref:   (1, 1, TM) f32 lane-dense output tile
        x = x_ref[0].astype(mxu_dtype)            # cast in-kernel; HBM stays f32
        w0 = w0_ref[...].astype(mxu_dtype)
        w1 = w1_ref[...].astype(mxu_dtype)

        h0 = _leaky_relu(jnp.dot(w0, x, preferred_element_type=jnp.float32))       # (32, TM) f32
        h1 = _leaky_relu(jnp.dot(w1, h0.astype(mxu_dtype),
                                 preferred_element_type=jnp.float32))              # (16, TM) f32

        # Layers 2 & 3 off the MXU: per output channel o,
        #   h2_o = LeakyReLU(sum_k w2[o,k] * h1[k,:])   and   out += w3[0,o] * h2_o.
        # Dense (16, TM) multiplies + sublane reductions on VPU/XLU; f32 throughout.
        w2t = w2t_ref[...]                        # (16, 8) f32
        w3t = w3t_ref[...]                        # (8, 1)  f32
        out = None
        for o in range(8):
            h2_o = _leaky_relu(
                jnp.sum(h1 * w2t[:, o:o + 1], axis=0, keepdims=True))              # (1, TM)
            term = h2_o * w3t[o:o + 1, :]                                           # (1, TM)
            out = term if out is None else out + term
        o_ref[0] = out.astype(o_ref.dtype)

    return kernel


def similarity_measure1_forward(x_nchw, weights, *, tm=16384, mxu_bf16=True):
    """x_nchw: (N, 66, H, W) f32. weights: [(32,66), (16,32), (8,16), (1,8)] 1x1-conv weights."""
    n, c, h, w = x_nchw.shape
    assert c == 66
    hw = h * w

    # Pure reshape: channels stay contiguous on the sublane axis; no extra HBM pass.
    x = x_nchw.reshape(n, c, hw)

    w0, w1, w2, w3 = weights
    w2t = w2.T   # (16, 8): tiny; transposed so the kernel lane-slices one column per out-channel
    w3t = w3.T   # (8, 1)

    # Pixel tile on the lane axis.
    if hw <= 128:
        tm_eff = hw   # block == full array dim (allowed even when not 128-aligned)
    else:
        tm_eff = max(128, min(_round_up(tm, 128), _round_up(hw, 128)))
        # v7x shards "parallel" grid axes over 2 TensorCores: avoid 1 (or a tiny odd number
        # of) total grid steps so neither core sits idle / badly imbalanced.
        steps = n * pl.cdiv(hw, tm_eff)
        if steps < 2 or (steps % 2 == 1 and steps <= 3):
            tm_eff = max(128, _round_up(pl.cdiv(tm_eff, 2), 128))

    grid = (n, pl.cdiv(hw, tm_eff))   # last pixel tile may overhang; pixels are independent

    out = pl.pallas_call(
        _make_kernel(mxu_bf16),
        out_shape=jax.ShapeDtypeStruct((n, 1, hw), jnp.float32),   # output stays f32
        grid_spec=pltpu.PrefetchScalarGridSpec(
            num_scalar_prefetch=0,
            grid=grid,
            in_specs=[
                pl.BlockSpec((1, c, tm_eff), lambda ni, pi: (ni, 0, pi)),
                pl.BlockSpec(w0.shape, lambda ni, pi: (0, 0)),
                pl.BlockSpec(w1.shape, lambda ni, pi: (0, 0)),
                pl.BlockSpec(w2t.shape, lambda ni, pi: (0, 0)),
                pl.BlockSpec(w3t.shape, lambda ni, pi: (0, 0)),
            ],
            out_specs=pl.BlockSpec((1, 1, tm_eff), lambda ni, pi: (ni, 0, pi)),
        ),
        compiler_params=pltpu.CompilerParams(
            dimension_semantics=("parallel", "parallel"),
            vmem_limit_bytes=48 * 1024 * 1024,   # explicit (v5e default 16 MiB); below v7x 64 MiB
        ),
    )(x, w0, w1, w2t, w3t)

    return out.reshape(n, 1, h, w)


def init_weights(key):
    """Kaiming-normal (fan_out, relu): std = sqrt(2 / fan_out), fan_out = Cout*1*1."""
    shapes = [(32, 66), (16, 32), (8, 16), (1, 8)]   # (Cout, Cin) for the four 1x1 convs
    keys = jax.random.split(key, len(shapes))
    weights = []
    for k, (cout, cin) in zip(keys, shapes):
        std = (2.0 / cout) ** 0.5
        weights.append(std * jax.random.normal(k, (cout, cin), dtype=jnp.float32))
    return weights


def reference_forward(x_nchw, weights, *, match_kernel_dtypes=False):
    """Plain-JAX reference.  match_kernel_dtypes=True mirrors the kernel's bf16 MXU layers."""
    h = x_nchw
    for i, wt in enumerate(weights):
        if match_kernel_dtypes and i < 2:
            lhs, rhs = wt.astype(jnp.bfloat16), h.astype(jnp.bfloat16)
        else:
            lhs, rhs = wt, h
        h = jnp.einsum("oc,nchw->nohw", lhs, rhs, preferred_element_type=jnp.float32)
        if i < len(weights) - 1:
            h = _leaky_relu(h)
    return h


if __name__ == "__main__":
    key = jax.random.PRNGKey(0)
    k_x1, k_x2, k_w = jax.random.split(key, 3)

    weights = init_weights(k_w)

    # Case 1: N=2, 16x16 (hw=256) -> one 256-lane pixel tile per image, grid (2, 1).
    x1 = jax.random.normal(k_x1, (2, 66, 16, 16), dtype=jnp.float32)
    out1 = jax.block_until_ready(similarity_measure1_forward(x1, weights))
    assert out1.shape == (2, 1, 16, 16), out1.shape
    ref1_q = reference_forward(x1, weights, match_kernel_dtypes=True)
    ref1_f = reference_forward(x1, weights)
    assert jnp.allclose(out1, ref1_q, atol=1e-2, rtol=1e-2), "bf16-MXU kernel vs matched reference"
    assert jnp.allclose(out1, ref1_f, atol=1e-1, rtol=5e-2), "bf16-MXU kernel vs f32 reference"

    # Case 2: N=1, 32x32 (hw=1024) -> exercises the tile-halving path that keeps both
    # v7x TensorCores busy (grid becomes (1, 2) with 512-pixel tiles).
    x2 = jax.random.normal(k_x2, (1, 66, 32, 32), dtype=jnp.float32)
    out2 = jax.block_until_ready(similarity_measure1_forward(x2, weights))
    assert out2.shape == (1, 1, 32, 32), out2.shape
    ref2_q = reference_forward(x2, weights, match_kernel_dtypes=True)
    assert jnp.allclose(out2, ref2_q, atol=1e-2, rtol=1e-2), "bf16-MXU kernel mismatch (case 2)"

    # f32-MXU fallback path: near-exact vs the plain f32 reference.
    out3 = jax.block_until_ready(similarity_measure1_forward(x1, weights, mxu_bf16=False))
    assert jnp.allclose(out3, ref1_f, atol=1e-3, rtol=1e-3), "f32 kernel mismatch vs reference"

    print("KERNEL_OK")
</pallas_src>

<mosaic_0001>
module attributes {stable_mosaic.version = 11 : i64} {
  func.func @kernel(%arg0: i32, %arg1: i32, %arg2: memref<1x66x256xf32, #tpu.memory_space<vmem>>, %arg3: memref<32x66xf32, #tpu.memory_space<vmem>>, %arg4: memref<16x32xf32, #tpu.memory_space<vmem>>, %arg5: memref<16x8xf32, #tpu.memory_space<vmem>>, %arg6: memref<8x1xf32, #tpu.memory_space<vmem>>, %arg7: memref<1x1x256xf32, #tpu.memory_space<vmem>>) attributes {dimension_semantics = [#tpu.dimension_semantics<parallel>, #tpu.dimension_semantics<parallel>], iteration_bounds = array<i64: 2, 1>, scalar_prefetch = 0 : i64, scratch_operands = 0 : i64, tpu.core_type = #tpu.core_type<tc>, window_params = [{transform_indices = @transform_0, window_bounds = array<i64: 1, 66, 256>}, {pipeline_mode = #tpu.pipeline_mode<synchronous>, transform_indices = @transform_1, window_bounds = array<i64: 32, 66>}, {pipeline_mode = #tpu.pipeline_mode<synchronous>, transform_indices = @transform_2, window_bounds = array<i64: 16, 32>}, {pipeline_mode = #tpu.pipeline_mode<synchronous>, transform_indices = @transform_3, window_bounds = array<i64: 16, 8>}, {pipeline_mode = #tpu.pipeline_mode<synchronous>, transform_indices = @transform_4, window_bounds = array<i64: 8, 1>}, {transform_indices = @transform_5, window_bounds = array<i64: 1, 1, 256>}]} {
    %c0 = arith.constant 0 : index
    %c0_0 = arith.constant 0 : index
    %c0_1 = arith.constant 0 : index
    %0 = vector.load %arg2[%c0, %c0_0, %c0_1] : memref<1x66x256xf32, #tpu.memory_space<vmem>>, vector<1x66x256xf32>
    %1 = vector.shape_cast %0 : vector<1x66x256xf32> to vector<66x256xf32>
    %2 = arith.truncf %1 : vector<66x256xf32> to vector<66x256xbf16>
    %c0_2 = arith.constant 0 : index
    %c0_3 = arith.constant 0 : index
    %3 = vector.load %arg3[%c0_2, %c0_3] : memref<32x66xf32, #tpu.memory_space<vmem>>, vector<32x66xf32>
    %4 = arith.truncf %3 : vector<32x66xf32> to vector<32x66xbf16>
    %c0_4 = arith.constant 0 : index
    %c0_5 = arith.constant 0 : index
    %5 = vector.load %arg4[%c0_4, %c0_5] : memref<16x32xf32, #tpu.memory_space<vmem>>, vector<16x32xf32>
    %6 = arith.truncf %5 : vector<16x32xf32> to vector<16x32xbf16>
    %cst = arith.constant dense<0.000000e+00> : vector<32x256xf32>
    %7 = tpu.matmul %4, %2, %cst {dimension_numbers = #tpu.dot_dimension_numbers<[1], [0], [0], [1], [0, 0, 1, 1], [], []>} : vector<32x66xbf16>, vector<66x256xbf16>, vector<32x256xf32> -> vector<32x256xf32>
    %cst_6 = arith.constant 0.000000e+00 : f32
    %8 = vector.broadcast %cst_6 : f32 to vector<32x256xf32>
    %9 = arith.cmpf ogt, %7, %8 : vector<32x256xf32>
    %cst_7 = arith.constant 0.00999999977 : f32
    %10 = vector.broadcast %cst_7 : f32 to vector<32x256xf32>
    %11 = arith.mulf %10, %7 : vector<32x256xf32>
    %12 = arith.select %9, %7, %11 : vector<32x256xi1>, vector<32x256xf32>
    %13 = arith.truncf %12 : vector<32x256xf32> to vector<32x256xbf16>
    %cst_8 = arith.constant dense<0.000000e+00> : vector<16x256xf32>
    %14 = tpu.matmul %6, %13, %cst_8 {dimension_numbers = #tpu.dot_dimension_numbers<[1], [0], [0], [1], [0, 0, 1, 1], [], []>} : vector<16x32xbf16>, vector<32x256xbf16>, vector<16x256xf32> -> vector<16x256xf32>
    %cst_9 = arith.constant 0.000000e+00 : f32
    %15 = vector.broadcast %cst_9 : f32 to vector<16x256xf32>
    %16 = arith.cmpf ogt, %14, %15 : vector<16x256xf32>
    %cst_10 = arith.constant 0.00999999977 : f32
    %17 = vector.broadcast %cst_10 : f32 to vector<16x256xf32>
    %18 = arith.mulf %17, %14 : vector<16x256xf32>
    %19 = arith.select %16, %14, %18 : vector<16x256xi1>, vector<16x256xf32>
    %c0_11 = arith.constant 0 : index
    %c0_12 = arith.constant 0 : index
    %20 = vector.load %arg5[%c0_11, %c0_12] : memref<16x8xf32, #tpu.memory_space<vmem>>, vector<16x8xf32>
    %c0_13 = arith.constant 0 : index
    %c0_14 = arith.constant 0 : index
    %21 = vector.load %arg6[%c0_13, %c0_14] : memref<8x1xf32, #tpu.memory_space<vmem>>, vector<8x1xf32>
    %22 = vector.extract_strided_slice %20 {offsets = [0, 0], sizes = [16, 1], strides = [1, 1]} : vector<16x8xf32> to vector<16x1xf32>
    %23 = vector.broadcast %22 : vector<16x1xf32> to vector<16x256xf32>
    %24 = arith.mulf %19, %23 : vector<16x256xf32>
    %cst_15 = arith.constant dense<0.000000e+00> : vector<256xf32>
    %25 = vector.multi_reduction <add>, %24, %cst_15 [0] : vector<16x256xf32> to vector<256xf32>
    %26 = vector.shape_cast %25 : vector<256xf32> to vector<1x256xf32>
    %cst_16 = arith.constant 0.000000e+00 : f32
    %27 = vector.broadcast %cst_16 : f32 to vector<1x256xf32>
    %28 = arith.cmpf ogt, %26, %27 : vector<1x256xf32>
    %cst_17 = arith.constant 0.00999999977 : f32
    %29 = vector.broadcast %cst_17 : f32 to vector<1x256xf32>
    %30 = arith.mulf %29, %26 : vector<1x256xf32>
    %31 = arith.select %28, %26, %30 : vector<1x256xi1>, vector<1x256xf32>
    %32 = vector.extract_strided_slice %21 {offsets = [0, 0], sizes = [1, 1], strides = [1, 1]} : vector<8x1xf32> to vector<1x1xf32>
    %33 = vector.broadcast %32 : vector<1x1xf32> to vector<1x256xf32>
    %34 = arith.mulf %31, %33 : vector<1x256xf32>
    %35 = vector.extract_strided_slice %20 {offsets = [0, 1], sizes = [16, 1], strides = [1, 1]} : vector<16x8xf32> to vector<16x1xf32>
    %36 = vector.broadcast %35 : vector<16x1xf32> to vector<16x256xf32>
    %37 = arith.mulf %19, %36 : vector<16x256xf32>
    %cst_18 = arith.constant dense<0.000000e+00> : vector<256xf32>
    %38 = vector.multi_reduction <add>, %37, %cst_18 [0] : vector<16x256xf32> to vector<256xf32>
    %39 = vector.shape_cast %38 : vector<256xf32> to vector<1x256xf32>
    %cst_19 = arith.constant 0.000000e+00 : f32
    %40 = vector.broadcast %cst_19 : f32 to vector<1x256xf32>
    %41 = arith.cmpf ogt, %39, %40 : vector<1x256xf32>
    %cst_20 = arith.constant 0.00999999977 : f32
    %42 = vector.broadcast %cst_20 : f32 to vector<1x256xf32>
    %43 = arith.mulf %42, %39 : vector<1x256xf32>
    %44 = arith.select %41, %39, %43 : vector<1x256xi1>, vector<1x256xf32>
    %45 = vector.extract_strided_slice %21 {offsets = [1, 0], sizes = [1, 1], strides = [1, 1]} : vector<8x1xf32> to vector<1x1xf32>
    %46 = vector.broadcast %45 : vector<1x1xf32> to vector<1x256xf32>
    %47 = arith.mulf %44, %46 : vector<1x256xf32>
    %48 = arith.addf %34, %47 : vector<1x256xf32>
    %49 = vector.extract_strided_slice %20 {offsets = [0, 2], sizes = [16, 1], strides = [1, 1]} : vector<16x8xf32> to vector<16x1xf32>
    %50 = vector.broadcast %49 : vector<16x1xf32> to vector<16x256xf32>
    %51 = arith.mulf %19, %50 : vector<16x256xf32>
    %cst_21 = arith.constant dense<0.000000e+00> : vector<256xf32>
    %52 = vector.multi_reduction <add>, %51, %cst_21 [0] : vector<16x256xf32> to vector<256xf32>
    %53 = vector.shape_cast %52 : vector<256xf32> to vector<1x256xf32>
    %cst_22 = arith.constant 0.000000e+00 : f32
    %54 = vector.broadcast %cst_22 : f32 to vector<1x256xf32>
    %55 = arith.cmpf ogt, %53, %54 : vector<1x256xf32>
    %cst_23 = arith.constant 0.00999999977 : f32
    %56 = vector.broadcast %cst_23 : f32 to vector<1x256xf32>
    %57 = arith.mulf %56, %53 : vector<1x256xf32>
    %58 = arith.select %55, %53, %57 : vector<1x256xi1>, vector<1x256xf32>
    %59 = vector.extract_strided_slice %21 {offsets = [2, 0], sizes = [1, 1], strides = [1, 1]} : vector<8x1xf32> to vector<1x1xf32>
    %60 = vector.broadcast %59 : vector<1x1xf32> to vector<1x256xf32>
    %61 = arith.mulf %58, %60 : vector<1x256xf32>
    %62 = arith.addf %48, %61 : vector<1x256xf32>
    %63 = vector.extract_strided_slice %20 {offsets = [0, 3], sizes = [16, 1], strides = [1, 1]} : vector<16x8xf32> to vector<16x1xf32>
    %64 = vector.broadcast %63 : vector<16x1xf32> to vector<16x256xf32>
    %65 = arith.mulf %19, %64 : vector<16x256xf32>
    %cst_24 = arith.constant dense<0.000000e+00> : vector<256xf32>
    %66 = vector.multi_reduction <add>, %65, %cst_24 [0] : vector<16x256xf32> to vector<256xf32>
    %67 = vector.shape_cast %66 : vector<256xf32> to vector<1x256xf32>
    %cst_25 = arith.constant 0.000000e+00 : f32
    %68 = vector.broadcast %cst_25 : f32 to vector<1x256xf32>
    %69 = arith.cmpf ogt, %67, %68 : vector<1x256xf32>
    %cst_26 = arith.constant 0.00999999977 : f32
    %70 = vector.broadcast %cst_26 : f32 to vector<1x256xf32>
    %71 = arith.mulf %70, %67 : vector<1x256xf32>
    %72 = arith.select %69, %67, %71 : vector<1x256xi1>, vector<1x256xf32>
    %73 = vector.extract_strided_slice %21 {offsets = [3, 0], sizes = [1, 1], strides = [1, 1]} : vector<8x1xf32> to vector<1x1xf32>
    %74 = vector.broadcast %73 : vector<1x1xf32> to vector<1x256xf32>
    %75 = arith.mulf %72, %74 : vector<1x256xf32>
    %76 = arith.addf %62, %75 : vector<1x256xf32>
    %77 = vector.extract_strided_slice %20 {offsets = [0, 4], sizes = [16, 1], strides = [1, 1]} : vector<16x8xf32> to vector<16x1xf32>
    %78 = vector.broadcast %77 : vector<16x1xf32> to vector<16x256xf32>
    %79 = arith.mulf %19, %78 : vector<16x256xf32>
    %cst_27 = arith.constant dense<0.000000e+00> : vector<256xf32>
    %80 = vector.multi_reduction <add>, %79, %cst_27 [0] : vector<16x256xf32> to vector<256xf32>
    %81 = vector.shape_cast %80 : vector<256xf32> to vector<1x256xf32>
    %cst_28 = arith.constant 0.000000e+00 : f32
    %82 = vector.broadcast %cst_28 : f32 to vector<1x256xf32>
    %83 = arith.cmpf ogt, %81, %82 : vector<1x256xf32>
    %cst_29 = arith.constant 0.00999999977 : f32
    %84 = vector.broadcast %cst_29 : f32 to vector<1x256xf32>
    %85 = arith.mulf %84, %81 : vector<1x256xf32>
    %86 = arith.select %83, %81, %85 : vector<1x256xi1>, vector<1x256xf32>
    %87 = vector.extract_strided_slice %21 {offsets = [4, 0], sizes = [1, 1], strides = [1, 1]} : vector<8x1xf32> to vector<1x1xf32>
    %88 = vector.broadcast %87 : vector<1x1xf32> to vector<1x256xf32>
    %89 = arith.mulf %86, %88 : vector<1x256xf32>
    %90 = arith.addf %76, %89 : vector<1x256xf32>
    %91 = vector.extract_strided_slice %20 {offsets = [0, 5], sizes = [16, 1], strides = [1, 1]} : vector<16x8xf32> to vector<16x1xf32>
    %92 = vector.broadcast %91 : vector<16x1xf32> to vector<16x256xf32>
    %93 = arith.mulf %19, %92 : vector<16x256xf32>
    %cst_30 = arith.constant dense<0.000000e+00> : vector<256xf32>
    %94 = vector.multi_reduction <add>, %93, %cst_30 [0] : vector<16x256xf32> to vector<256xf32>
    %95 = vector.shape_cast %94 : vector<256xf32> to vector<1x256xf32>
    %cst_31 = arith.constant 0.000000e+00 : f32
    %96 = vector.broadcast %cst_31 : f32 to vector<1x256xf32>
    %97 = arith.cmpf ogt, %95, %96 : vector<1x256xf32>
    %cst_32 = arith.constant 0.00999999977 : f32
    %98 = vector.broadcast %cst_32 : f32 to vector<1x256xf32>
    %99 = arith.mulf %98, %95 : vector<1x256xf32>
    %100 = arith.select %97, %95, %99 : vector<1x256xi1>, vector<1x256xf32>
    %101 = vector.extract_strided_slice %21 {offsets = [5, 0], sizes = [1, 1], strides = [1, 1]} : vector<8x1xf32> to vector<1x1xf32>
    %102 = vector.broadcast %101 : vector<1x1xf32> to vector<1x256xf32>
    %103 = arith.mulf %100, %102 : vector<1x256xf32>
    %104 = arith.addf %90, %103 : vector<1x256xf32>
    %105 = vector.extract_strided_slice %20 {offsets = [0, 6], sizes = [16, 1], strides = [1, 1]} : vector<16x8xf32> to vector<16x1xf32>
    %106 = vector.broadcast %105 : vector<16x1xf32> to vector<16x256xf32>
    %107 = arith.mulf %19, %106 : vector<16x256xf32>
    %cst_33 = arith.constant dense<0.000000e+00> : vector<256xf32>
    %108 = vector.multi_reduction <add>, %107, %cst_33 [0] : vector<16x256xf32> to vector<256xf32>
    %109 = vector.shape_cast %108 : vector<256xf32> to vector<1x256xf32>
    %cst_34 = arith.constant 0.000000e+00 : f32
    %110 = vector.broadcast %cst_34 : f32 to vector<1x256xf32>
    %111 = arith.cmpf ogt, %109, %110 : vector<1x256xf32>
    %cst_35 = arith.constant 0.00999999977 : f32
    %112 = vector.broadcast %cst_35 : f32 to vector<1x256xf32>
    %113 = arith.mulf %112, %109 : vector<1x256xf32>
    %114 = arith.select %111, %109, %113 : vector<1x256xi1>, vector<1x256xf32>
    %115 = vector.extract_strided_slice %21 {offsets = [6, 0], sizes = [1, 1], strides = [1, 1]} : vector<8x1xf32> to vector<1x1xf32>
    %116 = vector.broadcast %115 : vector<1x1xf32> to vector<1x256xf32>
    %117 = arith.mulf %114, %116 : vector<1x256xf32>
    %118 = arith.addf %104, %117 : vector<1x256xf32>
    %119 = vector.extract_strided_slice %20 {offsets = [0, 7], sizes = [16, 1], strides = [1, 1]} : vector<16x8xf32> to vector<16x1xf32>
    %120 = vector.broadcast %119 : vector<16x1xf32> to vector<16x256xf32>
    %121 = arith.mulf %19, %120 : vector<16x256xf32>
    %cst_36 = arith.constant dense<0.000000e+00> : vector<256xf32>
    %122 = vector.multi_reduction <add>, %121, %cst_36 [0] : vector<16x256xf32> to vector<256xf32>
    %123 = vector.shape_cast %122 : vector<256xf32> to vector<1x256xf32>
    %cst_37 = arith.constant 0.000000e+00 : f32
    %124 = vector.broadcast %cst_37 : f32 to vector<1x256xf32>
    %125 = arith.cmpf ogt, %123, %124 : vector<1x256xf32>
    %cst_38 = arith.constant 0.00999999977 : f32
    %126 = vector.broadcast %cst_38 : f32 to vector<1x256xf32>
    %127 = arith.mulf %126, %123 : vector<1x256xf32>
    %128 = arith.select %125, %123, %127 : vector<1x256xi1>, vector<1x256xf32>
    %129 = vector.extract_strided_slice %21 {offsets = [7, 0], sizes = [1, 1], strides = [1, 1]} : vector<8x1xf32> to vector<1x1xf32>
    %130 = vector.broadcast %129 : vector<1x1xf32> to vector<1x256xf32>
    %131 = arith.mulf %128, %130 : vector<1x256xf32>
    %132 = arith.addf %118, %131 : vector<1x256xf32>
    %c0_39 = arith.constant 0 : index
    %c0_40 = arith.constant 0 : index
    %c0_41 = arith.constant 0 : index
    %133 = vector.load %arg7[%c0_39, %c0_40, %c0_41] : memref<1x1x256xf32, #tpu.memory_space<vmem>>, vector<1x1x256xf32>
    %134 = vector.shape_cast %133 : vector<1x1x256xf32> to vector<1x256xf32>
    %135 = vector.shape_cast %132 : vector<1x256xf32> to vector<1x1x256xf32>
    tpu.vector_store %arg7[%c0_39, %c0_40, %c0_41], %135 {strides = array<i32>} : memref<1x1x256xf32, #tpu.memory_space<vmem>>, vector<1x1x256xf32>,
    return
  }
  func.func @transform_0(%arg0: i32, %arg1: i32) -> (i32, i32, i32) {
    %c0_i32 = arith.constant 0 : i32
    %c0_i32_0 = arith.constant 0 : i32
    return %arg0, %c0_i32, %arg1 : i32, i32, i32
  }
  func.func @transform_1(%arg0: i32, %arg1: i32) -> (i32, i32) {
    %c0_i32 = arith.constant 0 : i32
    %c0_i32_0 = arith.constant 0 : i32
    %c0_i32_1 = arith.constant 0 : i32
    return %c0_i32, %c0_i32_0 : i32, i32
  }
  func.func @transform_2(%arg0: i32, %arg1: i32) -> (i32, i32) {
    %c0_i32 = arith.constant 0 : i32
    %c0_i32_0 = arith.constant 0 : i32
    %c0_i32_1 = arith.constant 0 : i32
    return %c0_i32, %c0_i32_0 : i32, i32
  }
  func.func @transform_3(%arg0: i32, %arg1: i32) -> (i32, i32) {
    %c0_i32 = arith.constant 0 : i32
    %c0_i32_0 = arith.constant 0 : i32
    %c0_i32_1 = arith.constant 0 : i32
    return %c0_i32, %c0_i32_0 : i32, i32
  }
  func.func @transform_4(%arg0: i32, %arg1: i32) -> (i32, i32) {
    %c0_i32 = arith.constant 0 : i32
    %c0_i32_0 = arith.constant 0 : i32
    %c0_i32_1 = arith.constant 0 : i32
    return %c0_i32, %c0_i32_0 : i32, i32
  }
  func.func @transform_5(%arg0: i32, %arg1: i32) -> (i32, i32, i32) {
    %c0_i32 = arith.constant 0 : i32
    %c0_i32_0 = arith.constant 0 : i32
    return %arg0, %c0_i32, %arg1 : i32, i32, i32
  }
}

</mosaic_0001>

<llo_original>
// kernel: tpu_custom_call.1
$region0: #{tpu_custom_call.1}
  #allocation0 [shape = 'u32[]', space=smem, size = 0x4, offset = 0x4, fixed_abs, tag = 'smem constant byte address 0x4 - core index']
  #allocation1 [shape = 'u32[144,128]{1,0:T(1,128)}', space=vmem, size = 0x12000, scoped, tag = 'internal scratch']
  %s0 = inlined_call_operand.vmem [shape: f32[2,66,256], index: 0, kind: input, shape index: {}]
  %s1 = inlined_call_operand.vmem [shape: f32[32,66], index: 1, kind: input, shape index: {}]
  %s2 = inlined_call_operand.vmem [shape: f32[16,32], index: 2, kind: input, shape index: {}]
  %s3 = inlined_call_operand.vmem [shape: f32[16,8], index: 3, kind: input, shape index: {}]
  %s4 = inlined_call_operand.vmem [shape: f32[8,1], index: 4, kind: input, shape index: {}]
  %s5 = inlined_call_operand.hbm [shape: f32[2,1,256], index: 5, kind: output, shape index: {}]
  %s6 = sld [smem:[#allocation0]]
  $region53: #{tpu_custom_call.1} parent=0
    _
  %s8 = ssub.s32 1, %s6
  %s9 = scalar_select 0, %s8, %s6
  $region1: #{tpu_custom_call.1} parent=0
    #allocation2 [shape = 'u8[2048]{0}', space=vmem, size = 0x800, scoped, tag = 'output window, operand 0']
    #allocation3 [shape = 's32[2]{0}', space=sflag, size = 0x8, scoped, tag = 'scoped memory for tpu_custom_call.1']
    %10 = vsyncpa [#allocation3], 0
    %s11 = scalar_lea.sflag [#allocation3], 1
    %12 = vsyncpa %s11, 0
    loop: start=0, step=1, limit=4
    $region2: #{tpu_custom_call.1} parent=1 // loop_pre_header
      _
    $region3: #{tpu_custom_call.1} parent=1 // loop_header
      %s14 = sphi 0, %s18
      %p15 = scmp.ge.s32.totalorder %s14, 4
      %s21 = sphi 0, %s33
      %s22 = sphi 0, %s29
      %s23 = sphi 0, %s21
      %s24 = sphi 0, %s22
      %s25 = sphi 0, %s23
      %s26 = sphi 0, %s24
      %s38 = sphi 0, %s40
      %s41 = sphi 0, %s38
      %s42 = sphi 0, %s41
      %s58 = sphi 0, %s42
      %s62 = sphi 0, %s62
      %s64 = sphi 0, %s62
      %s65 = sphi 0, %s64
      %s79 = sphi 0, %s65
      %s83 = sphi 0, %s83
      %s85 = sphi 0, %s83
      %s86 = sphi 0, %s85
      %s100 = sphi 0, %s86
      %s104 = sphi 0, %s104
      %s106 = sphi 0, %s104
      %s107 = sphi 0, %s106
      %s121 = sphi 0, %s107
      %s125 = sphi 0, %s125
      %s127 = sphi 0, %s125
      %s128 = sphi 0, %s127
      %s142 = sphi 0, %s128
      %s150 = sphi 0, %s152
      %s153 = sphi 0, %s150
      %s154 = sphi 0, %s153
      %s170 = sphi 0, %s154
    $region4: #{tpu_custom_call.1} parent=1 // loop_header_branch
      %17 = sbr.rel (%p15) target = $region8
    $region5: #{tpu_custom_call.1} parent=1 // loop_body
      %s19 = ssub.s32 %s14, 1
      %s20 = ssub.s32 %s14, 2
      %s27 = sadd.s32 1, %s22
      %p28 = scmp.ge.s32.totalorder %s27, 1
      %s29 = scalar_select %p28, 0, %s27
      %s30 = sadd.s32 1, %s21
      %s31 = scalar_select %p28, %s30, %s21
      %p32 = scmp.ge.s32.totalorder %s31, 2
      %s33 = scalar_select %p32, 0, %s31
      %s34 = ssub.s32 %s21, %s33
      %s35 = ssub.s32 %s22, %s29
      %s36 = sor.u32 %s34, %s35
      %p37 = scmp.eq.s32.totalorder %s36, 0
      %s39 = sadd.s32 %s38, 1
      %s40 = scalar_select %p37, %s38, %s39
      %p43 = pneg %p37
      %p44 = scmp.eq.s32.totalorder %s14, 1
      %p45 = por %p43, %p44
      %p46 = scmp.ne.s32.totalorder %s38, %s41
      %p47 = scmp.eq.s32.totalorder %s14, 0
      %p48 = por %p46, %p47
      %p49 = scmp.ne.s32.totalorder %s38, %s41
      %p50 = scmp.eq.s32.totalorder %s19, 1
      %p51 = por %p49, %p50
      %p52 = scmp.ne.s32.totalorder %s41, %s42
      %p53 = scmp.eq.s32.totalorder %s19, 0
      %p54 = por %p52, %p53
      %p55 = scmp.ne.s32.totalorder %s41, %s42
      %p56 = scmp.eq.s32.totalorder %s20, 1
      %p57 = por %p55, %p56
      %p59 = scmp.ne.s32.totalorder %s42, %s58
      %p60 = scmp.eq.s32.totalorder %s20, 0
      %p61 = por %p59, %p60
      %s63 = sadd.s32 %s62, 1
      %p66 = scmp.eq.s32.totalorder %s14, 1
      %p67 = scmp.ne.s32.totalorder %s62, %s64
      %p68 = scmp.eq.s32.totalorder %s14, 0
      %p69 = por %p67, %p68
      %p70 = scmp.ne.s32.totalorder %s62, %s64
      %p71 = scmp.eq.s32.totalorder %s19, 1
      %p72 = por %p70, %p71
      %p73 = scmp.ne.s32.totalorder %s64, %s65
      %p74 = scmp.eq.s32.totalorder %s19, 0
      %p75 = por %p73, %p74
      %p76 = scmp.ne.s32.totalorder %s64, %s65
      %p77 = scmp.eq.s32.totalorder %s20, 1
      %p78 = por %p76, %p77
      %p80 = scmp.ne.s32.totalorder %s65, %s79
      %p81 = scmp.eq.s32.totalorder %s20, 0
      %p82 = por %p80, %p81
      %s84 = sadd.s32 %s83, 1
      %p87 = scmp.eq.s32.totalorder %s14, 1
      %p88 = scmp.ne.s32.totalorder %s83, %s85
      %p89 = scmp.eq.s32.totalorder %s14, 0
      %p90 = por %p88, %p89
      %p91 = scmp.ne.s32.totalorder %s83, %s85
      %p92 = scmp.eq.s32.totalorder %s19, 1
      %p93 = por %p91, %p92
      %p94 = scmp.ne.s32.totalorder %s85, %s86
      %p95 = scmp.eq.s32.totalorder %s19, 0
      %p96 = por %p94, %p95
      %p97 = scmp.ne.s32.totalorder %s85, %s86
      %p98 = scmp.eq.s32.totalorder %s20, 1
      %p99 = por %p97, %p98
      %p101 = scmp.ne.s32.totalorder %s86, %s100
      %p102 = scmp.eq.s32.totalorder %s20, 0
      %p103 = por %p101, %p102
      %s105 = sadd.s32 %s104, 1
      %p108 = scmp.eq.s32.totalorder %s14, 1
      %p109 = scmp.ne.s32.totalorder %s104, %s106
      %p110 = scmp.eq.s32.totalorder %s14, 0
      %p111 = por %p109, %p110
      %p112 = scmp.ne.s32.totalorder %s104, %s106
      %p113 = scmp.eq.s32.totalorder %s19, 1
      %p114 = por %p112, %p113
      %p115 = scmp.ne.s32.totalorder %s106, %s107
      %p116 = scmp.eq.s32.totalorder %s19, 0
      %p117 = por %p115, %p116
      %p118 = scmp.ne.s32.totalorder %s106, %s107
      %p119 = scmp.eq.s32.totalorder %s20, 1
      %p120 = por %p118, %p119
      %p122 = scmp.ne.s32.totalorder %s107, %s121
      %p123 = scmp.eq.s32.totalorder %s20, 0
      %p124 = por %p122, %p123
      %s126 = sadd.s32 %s125, 1
      %p129 = scmp.eq.s32.totalorder %s14, 1
      %p130 = scmp.ne.s32.totalorder %s125, %s127
      %p131 = scmp.eq.s32.totalorder %s14, 0
      %p132 = por %p130, %p131
      %p133 = scmp.ne.s32.totalorder %s125, %s127
      %p134 = scmp.eq.s32.totalorder %s19, 1
      %p135 = por %p133, %p134
      %p136 = scmp.ne.s32.totalorder %s127, %s128
      %p137 = scmp.eq.s32.totalorder %s19, 0
      %p138 = por %p136, %p137
      %p139 = scmp.ne.s32.totalorder %s127, %s128
      %p140 = scmp.eq.s32.totalorder %s20, 1
      %p141 = por %p139, %p140
      %p143 = scmp.ne.s32.totalorder %s128, %s142
      %p144 = scmp.eq.s32.totalorder %s20, 0
      %p145 = por %p143, %p144
      %s146 = ssub.s32 %s21, %s33
      %s147 = ssub.s32 %s22, %s29
      %s148 = sor.u32 %s146, %s147
      %p149 = scmp.eq.s32.totalorder %s148, 0
      %s151 = sadd.s32 %s150, 1
      %s152 = scalar_select %p149, %s150, %s151
      %p155 = pneg %p149
      %p156 = scmp.eq.s32.totalorder %s14, 1
      %p157 = por %p155, %p156
      %p158 = scmp.ne.s32.totalorder %s150, %s153
      %p159 = scmp.eq.s32.totalorder %s14, 0
      %p160 = por %p158, %p159
      %p161 = scmp.ne.s32.totalorder %s150, %s153
      %p162 = scmp.eq.s32.totalorder %s19, 1
      %p163 = por %p161, %p162
      %p164 = scmp.ne.s32.totalorder %s153, %s154
      %p165 = scmp.eq.s32.totalorder %s19, 0
      %p166 = por %p164, %p165
      %p167 = scmp.ne.s32.totalorder %s153, %s154
      %p168 = scmp.eq.s32.totalorder %s20, 1
      %p169 = por %p167, %p168
      %p171 = scmp.ne.s32.totalorder %s154, %s170
      %p172 = scmp.eq.s32.totalorder %s20, 0
      %p173 = por %p171, %p172
      %p174 = scmp.le.s32.totalorder 1, %s14
      %p175 = scmp.lt.s32.totalorder %s14, 3
      %p176 = pnand %p174, %p175
      %p177 = pneg %p176
      // Predicated region
      $region9: #{tpu_custom_call.1} parent=5 // pred_check
        _
      $region10: #{tpu_custom_call.1} parent=5 // pred_check_branch
        %179 = sbr.rel (%p176) target = $region12
      $region11: #{tpu_custom_call.1} parent=5 // pred_region
        %s180 = ssub.s32 %s14, 1
        // Predicated region
        $region13: #{tpu_custom_call.1} parent=11 // pred_check
          %p181 = pneg %p75
        $region14: #{tpu_custom_call.1} parent=11 // pred_check_branch
          %183 = sbr.rel (%p181) target = $region16
        $region15: #{tpu_custom_call.1} parent=11 // pred_region
          _
        $region16: #{tpu_custom_call.1} parent=11 // pred_fallthru
          _
        // Predicated region
        $region17: #{tpu_custom_call.1} parent=11 // pred_check
          %p184 = pneg %p96
        $region18: #{tpu_custom_call.1} parent=11 // pred_check_branch
          %186 = sbr.rel (%p184) target = $region20
        $region19: #{tpu_custom_call.1} parent=11 // pred_region
          _
        $region20: #{tpu_custom_call.1} parent=11 // pred_fallthru
          _
        // Predicated region
        $region21: #{tpu_custom_call.1} parent=11 // pred_check
          %p187 = pneg %p117
        $region22: #{tpu_custom_call.1} parent=11 // pred_check_branch
          %189 = sbr.rel (%p187) target = $region24
        $region23: #{tpu_custom_call.1} parent=11 // pred_region
          _
        $region24: #{tpu_custom_call.1} parent=11 // pred_fallthru
          _
        // Predicated region
        $region25: #{tpu_custom_call.1} parent=11 // pred_check
          %p190 = pneg %p138
        $region26: #{tpu_custom_call.1} parent=11 // pred_check_branch
          %192 = sbr.rel (%p190) target = $region28
        $region27: #{tpu_custom_call.1} parent=11 // pred_region
          _
        $region28: #{tpu_custom_call.1} parent=11 // pred_fallthru
          _
      $region12: #{tpu_custom_call.1} parent=5 // pred_fallthru
        _
      %p193 = scmp.lt.s32.totalorder %s14, 2
      // Predicated region
      $region29: #{tpu_custom_call.1} parent=5 // pred_check
        %p194 = pneg %p193
      $region30: #{tpu_custom_call.1} parent=5 // pred_check_branch
        %196 = sbr.rel (%p194) target = $region32
      $region31: #{tpu_custom_call.1} parent=5 // pred_region
        // Predicated region
        $region33: #{tpu_custom_call.1} parent=31 // pred_check
          %p197 = pneg %p48
        $region34: #{tpu_custom_call.1} parent=31 // pred_check_branch
          %199 = sbr.rel (%p197) target = $region36
        $region35: #{tpu_custom_call.1} parent=31 // pred_region
          %s200 = smul.u32 2, %s22
          %p201 = scmp.lt.s32.totalorder %s21, 1
          %s202 = scalar_select %p201, %s21, 1
          %p203 = scmp.lt.s32.totalorder %s200, 1
          %s204 = scalar_select %p203, %s200, 1
          %s205 = smul.addr %s202, 18
          %s206 = sadd.s32 %s204, %s205
          %s207 = smul.addr %s206, 8
          %s208 = scalar_lea.vmem %s0, %s207
          %s209 = smul.u32 2, %s22
        $region36: #{tpu_custom_call.1} parent=31 // pred_fallthru
          _
      $region32: #{tpu_custom_call.1} parent=5 // pred_fallthru
        _
      %p210 = scmp.le.s32.totalorder 1, %s14
      %p211 = scmp.lt.s32.totalorder %s14, 3
      %p212 = pnand %p210, %p211
      %p213 = pneg %p212
      // Predicated region
      $region37: #{tpu_custom_call.1} parent=5 // pred_check
        _
      $region38: #{tpu_custom_call.1} parent=5 // pred_check_branch
        %215 = sbr.rel (%p212) target = $region40
      $region39: #{tpu_custom_call.1} parent=5 // pred_region
        %s216 = ssub.s32 %s14, 1
        %s217 = smul.u32 2, %s24
        %p218 = scmp.lt.s32.totalorder %s23, 1
        %s219 = scalar_select %p218, %s23, 1
        %p220 = scmp.lt.s32.totalorder %s217, 1
        %s221 = scalar_select %p220, %s217, 1
        %s222 = smul.addr %s219, 18
        %s223 = sadd.s32 %s221, %s222
        %s224 = smul.addr %s223, 8
        %s225 = scalar_lea.vmem %s0, %s224
        %p226 = pneg %p54
        %p227 = pneg %p51
        %p228 = pneg %p75
        %p229 = pneg %p72
        %p230 = pneg %p96
        %p231 = pneg %p93
        %p232 = pneg %p117
        %p233 = pneg %p114
        %p234 = pneg %p138
        %p235 = pneg %p135
        %p236 = pneg %p166
        %p237 = pneg %p163
        %s238 = sand.u32 %s153, 1
        %s239 = scalar_lea.sflag [#allocation3], %s238
        %s240 = sand.u32 %s153, 1
        %s241 = smul.addr %s240, 2
        %s242 = scalar_lea.vmem [#allocation2], %s241
        %s243 = smul.u32 2, %s24
        %p244 = scmp.lt.s32.totalorder %s23, 1
        %s245 = scalar_select %p244, %s23, 1
        %p246 = scmp.lt.s32.totalorder %s243, 1
        %s247 = scalar_select %p246, %s243, 1
        %s248 = smul.addr %s245, 18
        %s249 = sadd.s32 %s247, %s248
        %s250 = smul.addr %s249, 8
        %s251 = scalar_lea.vmem %s0, %s250
        %s252 = smul.u32 2, %s24
        %s253 = smul.u32 2, %s24
        %v255 = vld [vmem:[%s251] sm:$0xff]
        %v256 = vld [vmem:[%s251 + $0x8] sm:$0xff]
        %v257 = vld [vmem:[%s251 + $0x10] sm:$0xff]
        %v258 = vld [vmem:[%s251 + $0x18] sm:$0xff]
        %v259 = vld [vmem:[%s251 + $0x20] sm:$0xff]
        %v260 = vld [vmem:[%s251 + $0x28] sm:$0xff]
        %v261 = vld [vmem:[%s251 + $0x30] sm:$0xff]
        %v262 = vld [vmem:[%s251 + $0x38] sm:$0xff]
        %v263 = vld [vmem:[%s251 + $0x40] sm:$0xff]
        %v264 = vld [vmem:[%s251 + $0x48] sm:$0xff]
        %v265 = vld [vmem:[%s251 + $0x50] sm:$0xff]
        %v266 = vld [vmem:[%s251 + $0x58] sm:$0xff]
        %v267 = vld [vmem:[%s251 + $0x60] sm:$0xff]
        %v268 = vld [vmem:[%s251 + $0x68] sm:$0xff]
        %v269 = vld [vmem:[%s251 + $0x70] sm:$0xff]
        %v270 = vld [vmem:[%s251 + $0x78] sm:$0xff]
        %v271 = vld [vmem:[%s251 + $0x80] sm:$0x3]
        %v272 = vld [vmem:[%s251 + $0x88] sm:$0x3]
        %v273 = vpack.c.bf16 %v257, %v255
        %v274 = vpack.c.bf16 %v258, %v256
        %v275 = vpack.c.bf16 %v261, %v259
        %v276 = vpack.c.bf16 %v262, %v260
        %v277 = vpack.c.bf16 %v265, %v263
        %v278 = vpack.c.bf16 %v266, %v264
        %v279 = vpack.c.bf16 %v269, %v267
        %v280 = vpack.c.bf16 %v270, %v268
        %v281 = vpack.c.bf16 %v271, %v271
        %v282 = vpack.c.bf16 %v272, %v272
        %v283 = vld [vmem:[%s1] sm:$0xff]
        %v284 = vld [vmem:[%s1 + $0x8] sm:$0xff]
        %v285 = vld [vmem:[%s1 + $0x10] sm:$0xff]
        %v286 = vld [vmem:[%s1 + $0x18] sm:$0xff]
        %v287 = vpack.c.bf16 %v284, %v283
        %v288 = vpack.c.bf16 %v286, %v285
        %v289 = vld [vmem:[%s2] sm:$0xff]
        %v290 = vld [vmem:[%s2 + $0x8] sm:$0xff]
        %v291 = vpack.c.bf16 %v290, %v289
        %vm292 = vcmask 539648
        %v294 = vsel %vm292, %v287, 0
        %v297 = vsel %vm292, %v288, 0
        %vm299 = vcmask 1040384
        %v301 = vsel %vm299, %v281, 0
        %v304 = vsel %vm299, %v282, 0
        %306 = vmatprep.subr.bf16.mxu0 %v274
        %307 = vmatpush1.bf16.msra.mxu0 %v273
        %308 = vmatprep.subr.bf16.mxu0 %v276
        %309 = vmatpush1.bf16.msra.mxu0 %v275
        %310 = vmatprep.subr.bf16.mxu0 %v278
        %311 = vmatpush1.bf16.msra.mxu0 %v277
        %312 = vmatprep.subr.bf16.mxu0 %v280
        %313 = vmatpush1.bf16.msra.mxu0 %v279
        %314 = vmatprep.subr.bf16.mxu0 %v304
        %315 = vmatpush1.bf16.msra.mxu0 %v301
        %316 = vmatprep.subr.bf16.mxu0 0
        %317 = vmatpush1.bf16.msra.mxu0 0
        %318 = vmatprep.subr.bf16.mxu0 0
        %319 = vmatpush1.bf16.msra.mxu0 0
        %320 = vmatprep.subr.bf16.mxu0 0
        %321 = vmatpush1.bf16.msra.mxu0 0
        %322 = vmatprep.subr.bf16.mxu0 0
        %323 = vmatpush1.bf16.msra.mxu0 0
        %324 = vmatprep.subr.bf16.mxu0 0
        %325 = vmatpush1.bf16.msra.mxu0 0
        %326 = vmatprep.subr.bf16.mxu0 0
        %327 = vmatpush1.bf16.msra.mxu0 0
        %328 = vmatprep.subr.bf16.mxu0 0
        %329 = vmatpush1.bf16.msra.mxu0 0
        %330 = vmatprep.subr.bf16.mxu0 0
        %331 = vmatpush1.bf16.msra.mxu0 0
        %332 = vmatprep.subr.bf16.mxu0 0
        %333 = vmatpush1.bf16.msra.mxu0 0
        %334 = vmatprep.subr.bf16.mxu0 0
        %335 = vmatpush1.bf16.msra.mxu0 0
        %336 = vmatprep.subr.bf16.mxu0 0
        %337 = vmatpush1.bf16.msra.mxu0 0
        %338 = vmatprep.mubr.bf16.mxu0 0
        %339 = vmatmul.mubr.bf16.gmra.mrb[0].mxu0 %v294
        %v340 = vpop.f32.mrb[0].mxu0
        %v341 = vadd.f32 0.0, %v340
        %v342 = vpop.f32.mrb[0].mxu0
        %v343 = vadd.f32 0.0, %v342
        %v344 = vpop.f32.mrb[0].mxu0
        %v345 = vadd.f32 0.0, %v344
        %v346 = vpop.f32.mrb[0].mxu0
        %v347 = vadd.f32 0.0, %v346
        %348 = vmatprep.mubr.bf16.mxu0 0
        %349 = vmatmul.mubr.bf16.gmra.mrb[0].mxu0 %v297
        %v350 = vpop.f32.mrb[0].mxu0
        %v351 = vadd.f32 0.0, %v350
        %v352 = vpop.f32.mrb[0].mxu0
        %v353 = vadd.f32 0.0, %v352
        %v354 = vpop.f32.mrb[0].mxu0
        %v355 = vadd.f32 0.0, %v354
        %v356 = vpop.f32.mrb[0].mxu0
        %v357 = vadd.f32 0.0, %v356
        %358 = vdwg.mxu0
        %vm359 = vcmp.gt.f32.partialorder %v341, 0.0
        %vm360 = vcmp.gt.f32.partialorder %v343, 0.0
        %vm361 = vcmp.gt.f32.partialorder %v345, 0.0
        %vm362 = vcmp.gt.f32.partialorder %v347, 0.0
        %vm363 = vcmp.gt.f32.partialorder %v351, 0.0
        %vm364 = vcmp.gt.f32.partialorder %v353, 0.0
        %vm365 = vcmp.gt.f32.partialorder %v355, 0.0
        %vm366 = vcmp.gt.f32.partialorder %v357, 0.0
        %v367 = vmul.f32 %v341, 0.01
        %v368 = vmul.f32 %v343, 0.01
        %v369 = vmul.f32 %v345, 0.01
        %v370 = vmul.f32 %v347, 0.01
        %v371 = vmul.f32 %v351, 0.01
        %v372 = vmul.f32 %v353, 0.01
        %v373 = vmul.f32 %v355, 0.01
        %v374 = vmul.f32 %v357, 0.01
        %v375 = vsel %vm359, %v341, %v367
        %v376 = vsel %vm360, %v343, %v368
        %v377 = vsel %vm361, %v345, %v369
        %v378 = vsel %vm362, %v347, %v370
        %v379 = vsel %vm363, %v351, %v371
        %v380 = vsel %vm364, %v353, %v372
        %v381 = vsel %vm365, %v355, %v373
        %v382 = vsel %vm366, %v357, %v374
        %v383 = vpack.c.bf16 %v377, %v375
        %v384 = vpack.c.bf16 %v378, %v376
        %v385 = vpack.c.bf16 %v381, %v379
        %v386 = vpack.c.bf16 %v382, %v380
        %vm387 = vcmask 261120
        %v389 = vsel %vm387, %v291, 0
        %391 = vmatprep.subr.bf16.mxu0 %v384
        %392 = vmatpush1.bf16.msra.mxu0 %v383
        %393 = vmatprep.subr.bf16.mxu0 %v386
        %394 = vmatpush1.bf16.msra.mxu0 %v385
        %395 = vmatprep.subr.bf16.mxu0 0
        %396 = vmatpush1.bf16.msra.mxu0 0
        %397 = vmatprep.subr.bf16.mxu0 0
        %398 = vmatpush1.bf16.msra.mxu0 0
        %399 = vmatprep.subr.bf16.mxu0 0
        %400 = vmatpush1.bf16.msra.mxu0 0
        %401 = vmatprep.subr.bf16.mxu0 0
        %402 = vmatpush1.bf16.msra.mxu0 0
        %403 = vmatprep.subr.bf16.mxu0 0
        %404 = vmatpush1.bf16.msra.mxu0 0
        %405 = vmatprep.subr.bf16.mxu0 0
        %406 = vmatpush1.bf16.msra.mxu0 0
        %407 = vmatprep.subr.bf16.mxu0 0
        %408 = vmatpush1.bf16.msra.mxu0 0
        %409 = vmatprep.subr.bf16.mxu0 0
        %410 = vmatpush1.bf16.msra.mxu0 0
        %411 = vmatprep.subr.bf16.mxu0 0
        %412 = vmatpush1.bf16.msra.mxu0 0
        %413 = vmatprep.subr.bf16.mxu0 0
        %414 = vmatpush1.bf16.msra.mxu0 0
        %415 = vmatprep.subr.bf16.mxu0 0
        %416 = vmatpush1.bf16.msra.mxu0 0
        %417 = vmatprep.subr.bf16.mxu0 0
        %418 = vmatpush1.bf16.msra.mxu0 0
        %419 = vmatprep.subr.bf16.mxu0 0
        %420 = vmatpush1.bf16.msra.mxu0 0
        %421 = vmatprep.subr.bf16.mxu0 0
        %422 = vmatpush1.bf16.msra.mxu0 0
        %423 = vmatprep.mubr.bf16.mxu0 0
        %424 = vmatmul.mubr.bf16.gmra.mrb[0].mxu0 %v389
        %v425 = vpop.f32.mrb[0].mxu0
        %v426 = vadd.f32 0.0, %v425
        %v427 = vpop.f32.mrb[0].mxu0
        %v428 = vadd.f32 0.0, %v427
        %v429 = vpop.f32.mrb[0].mxu0
        %v430 = vadd.f32 0.0, %v429
        %v431 = vpop.f32.mrb[0].mxu0
        %v432 = vadd.f32 0.0, %v431
        %433 = vdwg.mxu0
        %vm434 = vcmp.gt.f32.partialorder %v426, 0.0
        %vm435 = vcmp.gt.f32.partialorder %v428, 0.0
        %vm436 = vcmp.gt.f32.partialorder %v430, 0.0
        %vm437 = vcmp.gt.f32.partialorder %v432, 0.0
        %v438 = vmul.f32 %v426, 0.01
        %v439 = vmul.f32 %v428, 0.01
        %v440 = vmul.f32 %v430, 0.01
        %v441 = vmul.f32 %v432, 0.01
        %v442 = vsel %vm434, %v426, %v438
        %v443 = vsel %vm435, %v428, %v439
        %v444 = vsel %vm436, %v430, %v440
        %v445 = vsel %vm437, %v432, %v441
        %v446 = vld [vmem:[%s3] sm:$0xff]
        %v447 = vld [vmem:[%s3 + $0x8] sm:$0xff]
        %v448 = vld [vmem:[%s4] sm:$0xff]
        %450 = vset.pattern.permute.xlu0 0
        %451 = vperm.xlu0 %450, %v446
        %v452 = vpop.permute.xlu0 %451
        %455 = vset.pattern.permute.xlu0 0
        %456 = vperm.xlu0 %455, %v447
        %v457 = vpop.permute.xlu0 %456
        %v459 = vmul.f32 %v442, %v452
        %v460 = vmul.f32 %v443, %v452
        %v461 = vmul.f32 %v444, %v457
        %v462 = vmul.f32 %v445, %v457
        %v463 = vadd.f32 %v459, %v461
        %v464 = vrot.slane %v463, 4
        %v465 = vadd.f32 %v463, %v464
        %v466 = vrot.slane %v465, 2
        %v467 = vadd.f32 %v465, %v466
        %v468 = vrot.slane %v467, 1
        %v469 = vadd.f32 %v467, %v468
        %v470 = vadd.f32 %v460, %v462
        %v471 = vrot.slane %v470, 4
        %v472 = vadd.f32 %v470, %v471
        %v473 = vrot.slane %v472, 2
        %v474 = vadd.f32 %v472, %v473
        %v475 = vrot.slane %v474, 1
        %v476 = vadd.f32 %v474, %v475
        %vm477 = vcmp.gt.f32.partialorder %v469, 0.0
        %vm478 = vcmp.gt.f32.partialorder %v476, 0.0
        %v479 = vmul.f32 %v469, 0.01
        %v480 = vmul.f32 %v476, 0.01
        %v481 = vsel %vm477, %v469, %v479
        %v482 = vsel %vm478, %v476, %v480
        %484 = vset.pattern.permute.xlu0 0
        %485 = vperm.xlu0 %484, %v448
        %v486 = vpop.permute.xlu0 %485
        %v488 = vmul.f32 %v481, %v486
        %v489 = vmul.f32 %v482, %v486
        %490 = vset.pattern.permute.xlu0 1
        %491 = vperm.xlu0 %490, %v446
        %v492 = vpop.permute.xlu0 %491
        %494 = vset.pattern.permute.xlu0 1
        %495 = vperm.xlu0 %494, %v447
        %v496 = vpop.permute.xlu0 %495
        %v498 = vmul.f32 %v442, %v492
        %v499 = vmul.f32 %v443, %v492
        %v500 = vmul.f32 %v444, %v496
        %v501 = vmul.f32 %v445, %v496
        %v502 = vadd.f32 %v498, %v500
        %v503 = vrot.slane %v502, 4
        %v504 = vadd.f32 %v502, %v503
        %v505 = vrot.slane %v504, 2
        %v506 = vadd.f32 %v504, %v505
        %v507 = vrot.slane %v506, 1
        %v508 = vadd.f32 %v506, %v507
        %v509 = vadd.f32 %v499, %v501
        %v510 = vrot.slane %v509, 4
        %v511 = vadd.f32 %v509, %v510
        %v512 = vrot.slane %v511, 2
        %v513 = vadd.f32 %v511, %v512
        %v514 = vrot.slane %v513, 1
        %v515 = vadd.f32 %v513, %v514
        %vm516 = vcmp.gt.f32.partialorder %v508, 0.0
        %vm517 = vcmp.gt.f32.partialorder %v515, 0.0
        %v518 = vmul.f32 %v508, 0.01
        %v519 = vmul.f32 %v515, 0.01
        %v520 = vsel %vm516, %v508, %v518
        %v521 = vsel %vm517, %v515, %v519
        %v522 = vmul.f32 %v520, %v486
        %v523 = vmul.f32 %v521, %v486
        %v526 = vrot.slane %v522, 1
        %v527 = vrot.slane %v523, 1
        %v530 = vadd.f32 %v488, %v526
        %v531 = vadd.f32 %v489, %v527
        %532 = vset.pattern.permute.xlu0 2
        %533 = vperm.xlu0 %532, %v446
        %v534 = vpop.permute.xlu0 %533
        %536 = vset.pattern.permute.xlu0 2
        %537 = vperm.xlu0 %536, %v447
        %v538 = vpop.permute.xlu0 %537
        %v540 = vmul.f32 %v442, %v534
        %v541 = vmul.f32 %v443, %v534
        %v542 = vmul.f32 %v444, %v538
        %v543 = vmul.f32 %v445, %v538
        %v544 = vadd.f32 %v540, %v542
        %v545 = vrot.slane %v544, 4
        %v546 = vadd.f32 %v544, %v545
        %v547 = vrot.slane %v546, 2
        %v548 = vadd.f32 %v546, %v547
        %v549 = vrot.slane %v548, 1
        %v550 = vadd.f32 %v548, %v549
        %v551 = vadd.f32 %v541, %v543
        %v552 = vrot.slane %v551, 4
        %v553 = vadd.f32 %v551, %v552
        %v554 = vrot.slane %v553, 2
        %v555 = vadd.f32 %v553, %v554
        %v556 = vrot.slane %v555, 1
        %v557 = vadd.f32 %v555, %v556
        %vm558 = vcmp.gt.f32.partialorder %v550, 0.0
        %vm559 = vcmp.gt.f32.partialorder %v557, 0.0
        %v560 = vmul.f32 %v550, 0.01
        %v561 = vmul.f32 %v557, 0.01
        %v562 = vsel %vm558, %v550, %v560
        %v563 = vsel %vm559, %v557, %v561
        %v564 = vmul.f32 %v562, %v486
        %v565 = vmul.f32 %v563, %v486
        %v568 = vrot.slane %v564, 2
        %v569 = vrot.slane %v565, 2
        %v572 = vadd.f32 %v530, %v568
        %v573 = vadd.f32 %v531, %v569
        %574 = vset.pattern.permute.xlu0 3
        %575 = vperm.xlu0 %574, %v446
        %v576 = vpop.permute.xlu0 %575
        %578 = vset.pattern.permute.xlu0 3
        %579 = vperm.xlu0 %578, %v447
        %v580 = vpop.permute.xlu0 %579
        %v582 = vmul.f32 %v442, %v576
        %v583 = vmul.f32 %v443, %v576
        %v584 = vmul.f32 %v444, %v580
        %v585 = vmul.f32 %v445, %v580
        %v586 = vadd.f32 %v582, %v584
        %v587 = vrot.slane %v586, 4
        %v588 = vadd.f32 %v586, %v587
        %v589 = vrot.slane %v588, 2
        %v590 = vadd.f32 %v588, %v589
        %v591 = vrot.slane %v590, 1
        %v592 = vadd.f32 %v590, %v591
        %v593 = vadd.f32 %v583, %v585
        %v594 = vrot.slane %v593, 4
        %v595 = vadd.f32 %v593, %v594
        %v596 = vrot.slane %v595, 2
        %v597 = vadd.f32 %v595, %v596
        %v598 = vrot.slane %v597, 1
        %v599 = vadd.f32 %v597, %v598
        %vm600 = vcmp.gt.f32.partialorder %v592, 0.0
        %vm601 = vcmp.gt.f32.partialorder %v599, 0.0
        %v602 = vmul.f32 %v592, 0.01
        %v603 = vmul.f32 %v599, 0.01
        %v604 = vsel %vm600, %v592, %v602
        %v605 = vsel %vm601, %v599, %v603
        %v606 = vmul.f32 %v604, %v486
        %v607 = vmul.f32 %v605, %v486
        %v610 = vrot.slane %v606, 3
        %v611 = vrot.slane %v607, 3
        %v614 = vadd.f32 %v572, %v610
        %v615 = vadd.f32 %v573, %v611
        %616 = vset.pattern.permute.xlu0 4
        %617 = vperm.xlu0 %616, %v446
        %v618 = vpop.permute.xlu0 %617
        %620 = vset.pattern.permute.xlu0 4
        %621 = vperm.xlu0 %620, %v447
        %v622 = vpop.permute.xlu0 %621
        %v624 = vmul.f32 %v442, %v618
        %v625 = vmul.f32 %v443, %v618
        %v626 = vmul.f32 %v444, %v622
        %v627 = vmul.f32 %v445, %v622
        %v628 = vadd.f32 %v624, %v626
        %v629 = vrot.slane %v628, 4
        %v630 = vadd.f32 %v628, %v629
        %v631 = vrot.slane %v630, 2
        %v632 = vadd.f32 %v630, %v631
        %v633 = vrot.slane %v632, 1
        %v634 = vadd.f32 %v632, %v633
        %v635 = vadd.f32 %v625, %v627
        %v636 = vrot.slane %v635, 4
        %v637 = vadd.f32 %v635, %v636
        %v638 = vrot.slane %v637, 2
        %v639 = vadd.f32 %v637, %v638
        %v640 = vrot.slane %v639, 1
        %v641 = vadd.f32 %v639, %v640
        %vm642 = vcmp.gt.f32.partialorder %v634, 0.0
        %vm643 = vcmp.gt.f32.partialorder %v641, 0.0
        %v644 = vmul.f32 %v634, 0.01
        %v645 = vmul.f32 %v641, 0.01
        %v646 = vsel %vm642, %v634, %v644
        %v647 = vsel %vm643, %v641, %v645
        %v648 = vmul.f32 %v646, %v486
        %v649 = vmul.f32 %v647, %v486
        %v652 = vrot.slane %v648, 4
        %v653 = vrot.slane %v649, 4
        %v656 = vadd.f32 %v614, %v652
        %v657 = vadd.f32 %v615, %v653
        %658 = vset.pattern.permute.xlu0 5
        %659 = vperm.xlu0 %658, %v446
        %v660 = vpop.permute.xlu0 %659
        %662 = vset.pattern.permute.xlu0 5
        %663 = vperm.xlu0 %662, %v447
        %v664 = vpop.permute.xlu0 %663
        %v666 = vmul.f32 %v442, %v660
        %v667 = vmul.f32 %v443, %v660
        %v668 = vmul.f32 %v444, %v664
        %v669 = vmul.f32 %v445, %v664
        %v670 = vadd.f32 %v666, %v668
        %v671 = vrot.slane %v670, 4
        %v672 = vadd.f32 %v670, %v671
        %v673 = vrot.slane %v672, 2
        %v674 = vadd.f32 %v672, %v673
        %v675 = vrot.slane %v674, 1
        %v676 = vadd.f32 %v674, %v675
        %v677 = vadd.f32 %v667, %v669
        %v678 = vrot.slane %v677, 4
        %v679 = vadd.f32 %v677, %v678
        %v680 = vrot.slane %v679, 2
        %v681 = vadd.f32 %v679, %v680
        %v682 = vrot.slane %v681, 1
        %v683 = vadd.f32 %v681, %v682
        %vm684 = vcmp.gt.f32.partialorder %v676, 0.0
        %vm685 = vcmp.gt.f32.partialorder %v683, 0.0
        %v686 = vmul.f32 %v676, 0.01
        %v687 = vmul.f32 %v683, 0.01
        %v688 = vsel %vm684, %v676, %v686
        %v689 = vsel %vm685, %v683, %v687
        %v690 = vmul.f32 %v688, %v486
        %v691 = vmul.f32 %v689, %v486
        %v694 = vrot.slane %v690, 5
        %v695 = vrot.slane %v691, 5
        %v698 = vadd.f32 %v656, %v694
        %v699 = vadd.f32 %v657, %v695
        %700 = vset.pattern.permute.xlu0 6
        %701 = vperm.xlu0 %700, %v446
        %v702 = vpop.permute.xlu0 %701
        %704 = vset.pattern.permute.xlu0 6
        %705 = vperm.xlu0 %704, %v447
        %v706 = vpop.permute.xlu0 %705
        %v708 = vmul.f32 %v442, %v702
        %v709 = vmul.f32 %v443, %v702
        %v710 = vmul.f32 %v444, %v706
        %v711 = vmul.f32 %v445, %v706
        %v712 = vadd.f32 %v708, %v710
        %v713 = vrot.slane %v712, 4
        %v714 = vadd.f32 %v712, %v713
        %v715 = vrot.slane %v714, 2
        %v716 = vadd.f32 %v714, %v715
        %v717 = vrot.slane %v716, 1
        %v718 = vadd.f32 %v716, %v717
        %v719 = vadd.f32 %v709, %v711
        %v720 = vrot.slane %v719, 4
        %v721 = vadd.f32 %v719, %v720
        %v722 = vrot.slane %v721, 2
        %v723 = vadd.f32 %v721, %v722
        %v724 = vrot.slane %v723, 1
        %v725 = vadd.f32 %v723, %v724
        %vm726 = vcmp.gt.f32.partialorder %v718, 0.0
        %vm727 = vcmp.gt.f32.partialorder %v725, 0.0
        %v728 = vmul.f32 %v718, 0.01
        %v729 = vmul.f32 %v725, 0.01
        %v730 = vsel %vm726, %v718, %v728
        %v731 = vsel %vm727, %v725, %v729
        %v732 = vmul.f32 %v730, %v486
        %v733 = vmul.f32 %v731, %v486
        %v736 = vrot.slane %v732, 6
        %v737 = vrot.slane %v733, 6
        %v740 = vadd.f32 %v698, %v736
        %v741 = vadd.f32 %v699, %v737
        %742 = vset.pattern.permute.xlu0 7
        %743 = vperm.xlu0 %742, %v446
        %v744 = vpop.permute.xlu0 %743
        %746 = vset.pattern.permute.xlu0 7
        %747 = vperm.xlu0 %746, %v447
        %v748 = vpop.permute.xlu0 %747
        %v750 = vmul.f32 %v442, %v744
        %v751 = vmul.f32 %v443, %v744
        %v752 = vmul.f32 %v444, %v748
        %v753 = vmul.f32 %v445, %v748
        %v754 = vadd.f32 %v750, %v752
        %v755 = vrot.slane %v754, 4
        %v756 = vadd.f32 %v754, %v755
        %v757 = vrot.slane %v756, 2
        %v758 = vadd.f32 %v756, %v757
        %v759 = vrot.slane %v758, 1
        %v760 = vadd.f32 %v758, %v759
        %v761 = vadd.f32 %v751, %v753
        %v762 = vrot.slane %v761, 4
        %v763 = vadd.f32 %v761, %v762
        %v764 = vrot.slane %v763, 2
        %v765 = vadd.f32 %v763, %v764
        %v766 = vrot.slane %v765, 1
        %v767 = vadd.f32 %v765, %v766
        %vm768 = vcmp.gt.f32.partialorder %v760, 0.0
        %vm769 = vcmp.gt.f32.partialorder %v767, 0.0
        %v770 = vmul.f32 %v760, 0.01
        %v771 = vmul.f32 %v767, 0.01
        %v772 = vsel %vm768, %v760, %v770
        %v773 = vsel %vm769, %v767, %v771
        %v774 = vmul.f32 %v772, %v486
        %v775 = vmul.f32 %v773, %v486
        %v778 = vrot.slane %v774, 7
        %v779 = vrot.slane %v775, 7
        %v782 = vadd.f32 %v740, %v778
        %v783 = vadd.f32 %v741, %v779
        %v786 = vcombine.low %v782, %v783
        %v788 = vunpack.c.l.s4 1966171168
        %v789 = vunpack.c.0.s8 %v788
        %v790 = vlaneseq
        %v791 = vshrl.u32 %v790, 7
        %v792 = vsub.s32 %v789, %v791
        %v793 = vrot.slane %v786, %v792
        %v795 = vunpack.c.l.s4 1966171168
        %v796 = vunpack.c.0.s8 %v795
        %v797 = vlaneseq
        %v798 = vshrl.u32 %v797, 7
        %v799 = vsub.s32 %v796, %v798
        %v800 = vrot.slane %v793, %v799
        %v802 = vlaneseq
        %vm803 = vcmp.ge.s32.totalorder %v802, 0
        %vm804 = vcmp.lt.s32.totalorder %v802, 256
        %vm805 = vmand %vm803, %vm804
        %806 = vst.msk [vmem:[%s242] sm:$0x3] %vm805, %v800
        %s807 = sand.u32 %s153, 1
        %s808 = scalar_lea.sflag [#allocation3], %s807
        %s809 = sand.u32 %s153, 1
        %s810 = smul.addr %s809, 2
        %s811 = scalar_lea.vmem [#allocation2], %s810
        // Predicated region
        $region41: #{tpu_custom_call.1} parent=39 // pred_check
          %p812 = pneg %p163
        $region42: #{tpu_custom_call.1} parent=39 // pred_check_branch
          %814 = sbr.rel (%p812) target = $region44
        $region43: #{tpu_custom_call.1} parent=39 // pred_region
          %s815 = smul.u32 2, %s24
          %s817 = ssub.s32 32, 32
          %818 = vsyncadd %s808, %s817
          %s819 = smul.addr %s23, 2
          %s820 = sadd.s32 %s815, %s819
          %s821 = smul.addr %s820, 16
          %s822 = scalar_lea.hbm %s5, %s821
          %s824 = sshll.u32 %s811, 4
          %s825 = int_to_ptr.vmem [resolvable:$true] %s824
          %827 = dma.vmem_to_hbm [thread:$0]  %s825, 32, %s822, %s808
        $region44: #{tpu_custom_call.1} parent=39 // pred_fallthru
          _
      $region40: #{tpu_custom_call.1} parent=5 // pred_fallthru
        _
      %p828 = scmp.le.s32.totalorder 2, %s14
      // Predicated region
      $region45: #{tpu_custom_call.1} parent=5 // pred_check
        %p829 = pneg %p828
      $region46: #{tpu_custom_call.1} parent=5 // pred_check_branch
        %831 = sbr.rel (%p829) target = $region48
      $region47: #{tpu_custom_call.1} parent=5 // pred_region
        %s832 = ssub.s32 %s14, 2
        // Predicated region
        $region49: #{tpu_custom_call.1} parent=47 // pred_check
          %p833 = pneg %p169
        $region50: #{tpu_custom_call.1} parent=47 // pred_check_branch
          %835 = sbr.rel (%p833) target = $region52
        $region51: #{tpu_custom_call.1} parent=47 // pred_region
          %s836 = sand.u32 %s154, 1
          %s837 = scalar_lea.sflag [#allocation3], %s836
          %s838 = sand.u32 %s154, 1
          %s839 = smul.addr %s838, 2
          %s840 = scalar_lea.vmem [#allocation2], %s839
          %841 = dma.done %s837, 32
        $region52: #{tpu_custom_call.1} parent=47 // pred_fallthru
          _
      $region48: #{tpu_custom_call.1} parent=5 // pred_fallthru
        _
    $region6: #{tpu_custom_call.1} parent=1 // loop_footer
      %s18 = sadd.s32 1, %s14
    $region7: #{tpu_custom_call.1} parent=1 // loop_footer_branch
      %13 = sbr.rel target = $region3
    $region8: #{tpu_custom_call.1} parent=1 // loop_exit
      _
    %842 = vsyncpa [#allocation3], 1
    %s843 = scalar_lea.sflag [#allocation3], 1
    %844 = vsyncpa %s843, 1

</llo_original>
